<compile_context>
chip_gen: v5e
topology: v5e:2x2
jax: 0.10.0
libtpu: 0.0.40
codegen_flags: <defaults>
</compile_context>

<pallas_src>
import jax
import jax.numpy as jnp
import numpy as np
from jax.experimental import pallas as pl
from jax.experimental.pallas import tpu as pltpu


# ------------------------------ kernels ---------------------------------------
def _linear_bias_kernel(x_ref, w_ref, b_ref, o_ref):
    """Fast path: full-K contraction, one MXU dot per output tile, bias fused."""
    o_ref[...] = (
        jnp.dot(x_ref[...], w_ref[...], preferred_element_type=jnp.float32)
        + b_ref[...]
    ).astype(o_ref.dtype)


def _linear_bias_acc_kernel(x_ref, w_ref, b_ref, o_ref):
    """Tiled-K path: accumulate directly into the resident f32 output tile;
    initialise it with the broadcast bias at k == 0 (no scratch, no epilogue)."""
    @pl.when(pl.program_id(2) == 0)
    def _():
        o_ref[...] = jnp.broadcast_to(b_ref[...], o_ref.shape).astype(o_ref.dtype)

    o_ref[...] += jnp.dot(
        x_ref[...], w_ref[...], preferred_element_type=jnp.float32
    )


# ------------------------------ wrapper ----------------------------------------
def _round_up(x, m):
    return (x + m - 1) // m * m


def sparse_input_linear(
    x, w, b, *, tm_max=512, tn_max=256, tk_max=512, k_full_max=2048,
    compute_dtype=None,
):
    """y = x @ w + b   (x: (M,K), w: (K,N), b: (N,)) -> f32 (M,N)."""
    M, K = x.shape
    K2, N = w.shape
    assert K == K2 and b.shape == (N,)

    # Optional reduced-precision inputs (v6e/v7x bf16 MXU path); accumulation
    # and the output stay f32.
    if compute_dtype is not None:
        x = x.astype(compute_dtype)
        w = w.astype(compute_dtype)

    # ---- N (lane) tiling: pad only to the next multiple of 128 -----------------
    Np = _round_up(N, 128)
    tn = min(tn_max, Np)            # tn_max must be a multiple of 128
    nn = pl.cdiv(Np, tn)
    Np = nn * tn

    # ---- M (sublane) tiling: pad only to a multiple of 8 -----------------------
    Mp = _round_up(M, 8)
    nm = pl.cdiv(Mp, tm_max)
    if nm * nn == 1 and Mp >= 16:
        nm = 2                      # give both v7x TensorCores an output tile
    tm = Mp if nm == 1 else _round_up(pl.cdiv(Mp, nm), 8)
    Mp = nm * tm

    # ---- K: full extent (no padding, no reduction axis) when it fits -----------
    if K <= k_full_max:
        tk, nk, Kp = K, 1, K
    else:
        tk = tk_max
        Kp = _round_up(K, tk)
        nk = Kp // tk

    # ---- zero-pad only where required (zeros keep the GEMM + bias exact) -------
    if (Mp, Kp) != (M, K):
        x = jnp.pad(x, ((0, Mp - M), (0, Kp - K)))
    if (Kp, Np) != (K, N):
        w = jnp.pad(w, ((0, Kp - K), (0, Np - N)))
    b2 = b.reshape(1, N)
    if Np != N:
        b2 = jnp.pad(b2, ((0, 0), (0, Np - N)))

    if nk == 1:
        out = pl.pallas_call(
            _linear_bias_kernel,
            out_shape=jax.ShapeDtypeStruct((Mp, Np), jnp.float32),
            grid_spec=pltpu.PrefetchScalarGridSpec(
                num_scalar_prefetch=0,
                grid=(nm, nn),
                in_specs=[
                    pl.BlockSpec((tm, tk), lambda i, j: (i, 0)),   # x row-band
                    pl.BlockSpec((tk, tn), lambda i, j: (0, j)),   # w col-band
                    pl.BlockSpec((1, tn), lambda i, j: (0, j)),    # bias
                ],
                out_specs=pl.BlockSpec((tm, tn), lambda i, j: (i, j)),
            ),
            compiler_params=pltpu.CompilerParams(
                dimension_semantics=("parallel", "parallel"),
            ),
        )(x, w, b2)
    else:
        out = pl.pallas_call(
            _linear_bias_acc_kernel,
            out_shape=jax.ShapeDtypeStruct((Mp, Np), jnp.float32),
            grid_spec=pltpu.PrefetchScalarGridSpec(
                num_scalar_prefetch=0,
                grid=(nm, nn, nk),
                in_specs=[
                    pl.BlockSpec((tm, tk), lambda i, j, k: (i, k)),  # x tile
                    pl.BlockSpec((tk, tn), lambda i, j, k: (k, j)),  # w tile
                    pl.BlockSpec((1, tn), lambda i, j, k: (0, j)),   # bias
                ],
                out_specs=pl.BlockSpec((tm, tn), lambda i, j, k: (i, j)),
            ),
            compiler_params=pltpu.CompilerParams(
                dimension_semantics=("parallel", "parallel", "arbitrary"),
            ),
        )(x, w, b2)

    if (Mp, Np) != (M, N):
        out = out[:M, :N]
    return out


# ------------------------------ reference & init --------------------------------
def reference(x, w, b):
    return x @ w + b


def init_params(key, inp_dim, out_dim):
    """Matches SparseInputLinear.reset_parameters: U(-stdv, stdv), stdv=1/sqrt(out_dim)."""
    kw, kb = jax.random.split(key)
    stdv = 1.0 / np.sqrt(out_dim)
    w = jax.random.uniform(kw, (inp_dim, out_dim), jnp.float32, -stdv, stdv)
    b = jax.random.uniform(kb, (out_dim,), jnp.float32, -stdv, stdv)
    return w, b


# ------------------------------ test harness ------------------------------------
if __name__ == "__main__":
    key = jax.random.PRNGKey(0)

    cases = [
        # (rows, inp_dim, out_dim) — small shapes implied by the module's use
        # as pca = SparseInputLinear(init_dim, gcn_dim) on (num_ent, init_dim).
        (300, 48, 64),     # unaligned M/N, skinny K -> full-K fast path + N pad
        (512, 384, 256),   # aligned, 2 parallel M tiles, no padding at all
    ]

    ok = True
    for m, k, n in cases:
        key, kx, kp = jax.random.split(key, 3)
        x = 0.1 * jax.random.normal(kx, (m, k), jnp.float32)
        w, b = init_params(kp, k, n)

        y_ref = reference(x, w, b)

        # fast path (full-K, no reduction axis)
        y = jax.block_until_ready(sparse_input_linear(x, w, b))
        if y.shape != (m, n) or not bool(jnp.all(jnp.isfinite(y))):
            ok = False
        if not bool(jnp.allclose(y, y_ref, atol=1e-5, rtol=1e-5)):
            ok = False

    # also exercise the tiled-K reduction path (bias-init accumulator) with
    # small shapes by forcing a low full-K threshold.
    key, kx, kp = jax.random.split(key, 3)
    x = 0.1 * jax.random.normal(kx, (256, 384), jnp.float32)
    w, b = init_params(kp, 384, 256)
    y = jax.block_until_ready(
        sparse_input_linear(x, w, b, k_full_max=128, tk_max=128)
    )
    if not bool(jnp.allclose(y, reference(x, w, b), atol=1e-5, rtol=1e-5)):
        ok = False

    assert ok, "mismatch vs reference"
    print("KERNEL_OK")
</pallas_src>

<mosaic_0001>
module attributes {stable_mosaic.version = 11 : i64} {
  func.func @_linear_bias_kernel(%arg0: i32, %arg1: i32, %arg2: memref<152x48xf32, #tpu.memory_space<vmem>>, %arg3: memref<48x128xf32, #tpu.memory_space<vmem>>, %arg4: memref<1x128xf32, #tpu.memory_space<vmem>>, %arg5: memref<152x128xf32, #tpu.memory_space<vmem>>) attributes {dimension_semantics = [#tpu.dimension_semantics<parallel>, #tpu.dimension_semantics<parallel>], iteration_bounds = array<i64: 2, 1>, scalar_prefetch = 0 : i64, scratch_operands = 0 : i64, tpu.core_type = #tpu.core_type<tc>, window_params = [{transform_indices = @transform_0, window_bounds = array<i64: 152, 48>}, {transform_indices = @transform_1, window_bounds = array<i64: 48, 128>}, {transform_indices = @transform_2, window_bounds = array<i64: 1, 128>}, {transform_indices = @transform_3, window_bounds = array<i64: 152, 128>}]} {
    %c0 = arith.constant 0 : index
    %c0_0 = arith.constant 0 : index
    %0 = vector.load %arg2[%c0, %c0_0] : memref<152x48xf32, #tpu.memory_space<vmem>>, vector<152x48xf32>
    %c0_1 = arith.constant 0 : index
    %c0_2 = arith.constant 0 : index
    %1 = vector.load %arg3[%c0_1, %c0_2] : memref<48x128xf32, #tpu.memory_space<vmem>>, vector<48x128xf32>
    %cst = arith.constant dense<0.000000e+00> : vector<152x128xf32>
    %2 = tpu.matmul %0, %1, %cst {dimension_numbers = #tpu.dot_dimension_numbers<[1], [0], [0], [1], [0, 0, 1, 1], [], []>} : vector<152x48xf32>, vector<48x128xf32>, vector<152x128xf32> -> vector<152x128xf32>
    %c0_3 = arith.constant 0 : index
    %c0_4 = arith.constant 0 : index
    %3 = vector.load %arg4[%c0_3, %c0_4] : memref<1x128xf32, #tpu.memory_space<vmem>>, vector<1x128xf32>
    %4 = vector.broadcast %3 : vector<1x128xf32> to vector<152x128xf32>
    %5 = arith.addf %2, %4 : vector<152x128xf32>
    %c0_5 = arith.constant 0 : index
    %c0_6 = arith.constant 0 : index
    %6 = vector.load %arg5[%c0_5, %c0_6] : memref<152x128xf32, #tpu.memory_space<vmem>>, vector<152x128xf32>
    tpu.vector_store %arg5[%c0_5, %c0_6], %5 {strides = array<i32>} : memref<152x128xf32, #tpu.memory_space<vmem>>, vector<152x128xf32>,
    return
  }
  func.func @transform_0(%arg0: i32, %arg1: i32) -> (i32, i32) {
    %c0_i32 = arith.constant 0 : i32
    %c0_i32_0 = arith.constant 0 : i32
    return %arg0, %c0_i32 : i32, i32
  }
  func.func @transform_1(%arg0: i32, %arg1: i32) -> (i32, i32) {
    %c0_i32 = arith.constant 0 : i32
    %c0_i32_0 = arith.constant 0 : i32
    return %c0_i32, %arg1 : i32, i32
  }
  func.func @transform_2(%arg0: i32, %arg1: i32) -> (i32, i32) {
    %c0_i32 = arith.constant 0 : i32
    %c0_i32_0 = arith.constant 0 : i32
    return %c0_i32, %arg1 : i32, i32
  }
  func.func @transform_3(%arg0: i32, %arg1: i32) -> (i32, i32) {
    %c0_i32 = arith.constant 0 : i32
    return %arg0, %arg1 : i32, i32
  }
}

</mosaic_0001>

<llo_original>
// kernel: tpu_custom_call.1
$region0: #{tpu_custom_call.1}
  #allocation0 [shape = 'u32[]', space=smem, size = 0x4, offset = 0x4, fixed_abs, tag = 'smem constant byte address 0x4 - core index']
  #allocation1 [shape = 'u32[72,128]{1,0:T(1,128)}', space=vmem, size = 0x9000, scoped, tag = 'internal scratch']
  %s0 = inlined_call_operand.vmem [shape: f32[304,48], index: 0, kind: input, shape index: {}]
  %s1 = inlined_call_operand.vmem [shape: f32[48,128], index: 1, kind: input, shape index: {}]
  %s2 = inlined_call_operand.vmem [shape: f32[1,128], index: 2, kind: input, shape index: {}]
  %s3 = inlined_call_operand.hbm [shape: f32[304,128], index: 3, kind: output, shape index: {}]
  %s4 = sld [smem:[#allocation0]]
  $region45: #{tpu_custom_call.1} parent=0
    _
  %s6 = ssub.s32 1, %s4
  %s7 = scalar_select 0, %s6, %s4
  $region1: #{tpu_custom_call.1} parent=0
    #allocation2 [shape = 'u8[155648]{0}', space=vmem, size = 0x26000, scoped, tag = 'output window, operand 0']
    #allocation3 [shape = 's32[2]{0}', space=sflag, size = 0x8, scoped, tag = 'scoped memory for tpu_custom_call.1']
    %8 = vsyncpa [#allocation3], 0
    %s9 = scalar_lea.sflag [#allocation3], 1
    %10 = vsyncpa %s9, 0
    loop: start=0, step=1, limit=4
    $region2: #{tpu_custom_call.1} parent=1 // loop_pre_header
      _
    $region3: #{tpu_custom_call.1} parent=1 // loop_header
      %s12 = sphi 0, %s16
      %p13 = scmp.ge.s32.totalorder %s12, 4
      %s19 = sphi 0, %s31
      %s20 = sphi 0, %s27
      %s21 = sphi 0, %s19
      %s22 = sphi 0, %s20
      %s23 = sphi 0, %s21
      %s24 = sphi 0, %s22
      %s34 = sphi 0, %s36
      %s37 = sphi 0, %s34
      %s38 = sphi 0, %s37
      %s54 = sphi 0, %s38
      %s60 = sphi 0, %s62
      %s63 = sphi 0, %s60
      %s64 = sphi 0, %s63
      %s80 = sphi 0, %s64
      %s86 = sphi 0, %s88
      %s89 = sphi 0, %s86
      %s90 = sphi 0, %s89
      %s106 = sphi 0, %s90
      %s114 = sphi 0, %s116
      %s117 = sphi 0, %s114
      %s118 = sphi 0, %s117
      %s134 = sphi 0, %s118
    $region4: #{tpu_custom_call.1} parent=1 // loop_header_branch
      %15 = sbr.rel (%p13) target = $region8
    $region5: #{tpu_custom_call.1} parent=1 // loop_body
      %s17 = ssub.s32 %s12, 1
      %s18 = ssub.s32 %s12, 2
      %s25 = sadd.s32 1, %s20
      %p26 = scmp.ge.s32.totalorder %s25, 1
      %s27 = scalar_select %p26, 0, %s25
      %s28 = sadd.s32 1, %s19
      %s29 = scalar_select %p26, %s28, %s19
      %p30 = scmp.ge.s32.totalorder %s29, 2
      %s31 = scalar_select %p30, 0, %s29
      %s32 = ssub.s32 %s19, %s31
      %p33 = scmp.eq.s32.totalorder %s32, 0
      %s35 = sadd.s32 %s34, 1
      %s36 = scalar_select %p33, %s34, %s35
      %p39 = pneg %p33
      %p40 = scmp.eq.s32.totalorder %s12, 1
      %p41 = por %p39, %p40
      %p42 = scmp.ne.s32.totalorder %s34, %s37
      %p43 = scmp.eq.s32.totalorder %s12, 0
      %p44 = por %p42, %p43
      %p45 = scmp.ne.s32.totalorder %s34, %s37
      %p46 = scmp.eq.s32.totalorder %s17, 1
      %p47 = por %p45, %p46
      %p48 = scmp.ne.s32.totalorder %s37, %s38
      %p49 = scmp.eq.s32.totalorder %s17, 0
      %p50 = por %p48, %p49
      %p51 = scmp.ne.s32.totalorder %s37, %s38
      %p52 = scmp.eq.s32.totalorder %s18, 1
      %p53 = por %p51, %p52
      %p55 = scmp.ne.s32.totalorder %s38, %s54
      %p56 = scmp.eq.s32.totalorder %s18, 0
      %p57 = por %p55, %p56
      %s58 = ssub.s32 %s20, %s27
      %p59 = scmp.eq.s32.totalorder %s58, 0
      %s61 = sadd.s32 %s60, 1
      %s62 = scalar_select %p59, %s60, %s61
      %p65 = pneg %p59
      %p66 = scmp.eq.s32.totalorder %s12, 1
      %p67 = por %p65, %p66
      %p68 = scmp.ne.s32.totalorder %s60, %s63
      %p69 = scmp.eq.s32.totalorder %s12, 0
      %p70 = por %p68, %p69
      %p71 = scmp.ne.s32.totalorder %s60, %s63
      %p72 = scmp.eq.s32.totalorder %s17, 1
      %p73 = por %p71, %p72
      %p74 = scmp.ne.s32.totalorder %s63, %s64
      %p75 = scmp.eq.s32.totalorder %s17, 0
      %p76 = por %p74, %p75
      %p77 = scmp.ne.s32.totalorder %s63, %s64
      %p78 = scmp.eq.s32.totalorder %s18, 1
      %p79 = por %p77, %p78
      %p81 = scmp.ne.s32.totalorder %s64, %s80
      %p82 = scmp.eq.s32.totalorder %s18, 0
      %p83 = por %p81, %p82
      %s84 = ssub.s32 %s20, %s27
      %p85 = scmp.eq.s32.totalorder %s84, 0
      %s87 = sadd.s32 %s86, 1
      %s88 = scalar_select %p85, %s86, %s87
      %p91 = pneg %p85
      %p92 = scmp.eq.s32.totalorder %s12, 1
      %p93 = por %p91, %p92
      %p94 = scmp.ne.s32.totalorder %s86, %s89
      %p95 = scmp.eq.s32.totalorder %s12, 0
      %p96 = por %p94, %p95
      %p97 = scmp.ne.s32.totalorder %s86, %s89
      %p98 = scmp.eq.s32.totalorder %s17, 1
      %p99 = por %p97, %p98
      %p100 = scmp.ne.s32.totalorder %s89, %s90
      %p101 = scmp.eq.s32.totalorder %s17, 0
      %p102 = por %p100, %p101
      %p103 = scmp.ne.s32.totalorder %s89, %s90
      %p104 = scmp.eq.s32.totalorder %s18, 1
      %p105 = por %p103, %p104
      %p107 = scmp.ne.s32.totalorder %s90, %s106
      %p108 = scmp.eq.s32.totalorder %s18, 0
      %p109 = por %p107, %p108
      %s110 = ssub.s32 %s19, %s31
      %s111 = ssub.s32 %s20, %s27
      %s112 = sor.u32 %s110, %s111
      %p113 = scmp.eq.s32.totalorder %s112, 0
      %s115 = sadd.s32 %s114, 1
      %s116 = scalar_select %p113, %s114, %s115
      %p119 = pneg %p113
      %p120 = scmp.eq.s32.totalorder %s12, 1
      %p121 = por %p119, %p120
      %p122 = scmp.ne.s32.totalorder %s114, %s117
      %p123 = scmp.eq.s32.totalorder %s12, 0
      %p124 = por %p122, %p123
      %p125 = scmp.ne.s32.totalorder %s114, %s117
      %p126 = scmp.eq.s32.totalorder %s17, 1
      %p127 = por %p125, %p126
      %p128 = scmp.ne.s32.totalorder %s117, %s118
      %p129 = scmp.eq.s32.totalorder %s17, 0
      %p130 = por %p128, %p129
      %p131 = scmp.ne.s32.totalorder %s117, %s118
      %p132 = scmp.eq.s32.totalorder %s18, 1
      %p133 = por %p131, %p132
      %p135 = scmp.ne.s32.totalorder %s118, %s134
      %p136 = scmp.eq.s32.totalorder %s18, 0
      %p137 = por %p135, %p136
      %p138 = scmp.le.s32.totalorder 1, %s12
      %p139 = scmp.lt.s32.totalorder %s12, 3
      %p140 = pnand %p138, %p139
      %p141 = pneg %p140
      // Predicated region
      $region9: #{tpu_custom_call.1} parent=5 // pred_check
        _
      $region10: #{tpu_custom_call.1} parent=5 // pred_check_branch
        %143 = sbr.rel (%p140) target = $region12
      $region11: #{tpu_custom_call.1} parent=5 // pred_region
        %s144 = ssub.s32 %s12, 1
        // Predicated region
        $region13: #{tpu_custom_call.1} parent=11 // pred_check
          %p145 = pneg %p76
        $region14: #{tpu_custom_call.1} parent=11 // pred_check_branch
          %147 = sbr.rel (%p145) target = $region16
        $region15: #{tpu_custom_call.1} parent=11 // pred_region
          %p148 = scmp.lt.s32.totalorder %s22, 0
          %s149 = scalar_select %p148, %s22, 0
          %s150 = smul.addr %s149, 8
          %s151 = scalar_lea.vmem %s1, %s150
        $region16: #{tpu_custom_call.1} parent=11 // pred_fallthru
          _
        // Predicated region
        $region17: #{tpu_custom_call.1} parent=11 // pred_check
          %p152 = pneg %p102
        $region18: #{tpu_custom_call.1} parent=11 // pred_check_branch
          %154 = sbr.rel (%p152) target = $region20
        $region19: #{tpu_custom_call.1} parent=11 // pred_region
          %p155 = scmp.lt.s32.totalorder %s22, 0
          %s156 = scalar_select %p155, %s22, 0
          %s157 = scalar_lea.vmem %s2, %s156
        $region20: #{tpu_custom_call.1} parent=11 // pred_fallthru
          _
      $region12: #{tpu_custom_call.1} parent=5 // pred_fallthru
        _
      %p158 = scmp.lt.s32.totalorder %s12, 2
      // Predicated region
      $region21: #{tpu_custom_call.1} parent=5 // pred_check
        %p159 = pneg %p158
      $region22: #{tpu_custom_call.1} parent=5 // pred_check_branch
        %161 = sbr.rel (%p159) target = $region24
      $region23: #{tpu_custom_call.1} parent=5 // pred_region
        // Predicated region
        $region25: #{tpu_custom_call.1} parent=23 // pred_check
          %p162 = pneg %p44
        $region26: #{tpu_custom_call.1} parent=23 // pred_check_branch
          %164 = sbr.rel (%p162) target = $region28
        $region27: #{tpu_custom_call.1} parent=23 // pred_region
          %s165 = smul.u32 19, %s19
          %p166 = scmp.lt.s32.totalorder %s165, 37
          %s167 = scalar_select %p166, %s165, 37
          %s168 = smul.addr %s167, 8
          %s169 = scalar_lea.vmem %s0, %s168
          %s170 = smul.u32 19, %s19
        $region28: #{tpu_custom_call.1} parent=23 // pred_fallthru
          _
      $region24: #{tpu_custom_call.1} parent=5 // pred_fallthru
        _
      %p171 = scmp.le.s32.totalorder 1, %s12
      %p172 = scmp.lt.s32.totalorder %s12, 3
      %p173 = pnand %p171, %p172
      %p174 = pneg %p173
      // Predicated region
      $region29: #{tpu_custom_call.1} parent=5 // pred_check
        _
      $region30: #{tpu_custom_call.1} parent=5 // pred_check_branch
        %176 = sbr.rel (%p173) target = $region32
      $region31: #{tpu_custom_call.1} parent=5 // pred_region
        %s177 = ssub.s32 %s12, 1
        %s178 = smul.u32 19, %s21
        %p179 = scmp.lt.s32.totalorder %s178, 37
        %s180 = scalar_select %p179, %s178, 37
        %s181 = smul.addr %s180, 8
        %s182 = scalar_lea.vmem %s0, %s181
        %p183 = pneg %p50
        %p184 = pneg %p47
        %p185 = scmp.lt.s32.totalorder %s22, 0
        %s186 = scalar_select %p185, %s22, 0
        %s187 = smul.addr %s186, 8
        %s188 = scalar_lea.vmem %s1, %s187
        %p189 = pneg %p76
        %p190 = pneg %p73
        %p191 = scmp.lt.s32.totalorder %s22, 0
        %s192 = scalar_select %p191, %s22, 0
        %s193 = scalar_lea.vmem %s2, %s192
        %p194 = pneg %p102
        %p195 = pneg %p99
        %p196 = pneg %p130
        %p197 = pneg %p127
        %s198 = sand.u32 %s117, 1
        %s199 = scalar_lea.sflag [#allocation3], %s198
        %s200 = sand.u32 %s117, 1
        %s201 = smul.addr %s200, 152
        %s202 = scalar_lea.vmem [#allocation2], %s201
        %s203 = smul.u32 19, %s21
        %p204 = scmp.lt.s32.totalorder %s203, 37
        %s205 = scalar_select %p204, %s203, 37
        %s206 = smul.addr %s205, 8
        %s207 = scalar_lea.vmem %s0, %s206
        %s208 = smul.u32 19, %s21
        %p209 = scmp.lt.s32.totalorder %s22, 0
        %s210 = scalar_select %p209, %s22, 0
        %s211 = smul.addr %s210, 8
        %s212 = scalar_lea.vmem %s1, %s211
        %p213 = scmp.lt.s32.totalorder %s22, 0
        %s214 = scalar_select %p213, %s22, 0
        %s215 = scalar_lea.vmem %s2, %s214
        %s216 = smul.u32 19, %s21
        %v217 = vld [vmem:[%s207] sm:$0xff]
        %v218 = vld [vmem:[%s207 + $0x8] sm:$0xff]
        %v219 = vld [vmem:[%s207 + $0x10] sm:$0xff]
        %v220 = vld [vmem:[%s207 + $0x18] sm:$0xff]
        %v221 = vld [vmem:[%s207 + $0x20] sm:$0xff]
        %v222 = vld [vmem:[%s207 + $0x28] sm:$0xff]
        %v223 = vld [vmem:[%s207 + $0x30] sm:$0xff]
        %v224 = vld [vmem:[%s207 + $0x38] sm:$0xff]
        %v225 = vld [vmem:[%s207 + $0x40] sm:$0xff]
        %v226 = vld [vmem:[%s207 + $0x48] sm:$0xff]
        %v227 = vld [vmem:[%s207 + $0x50] sm:$0xff]
        %v228 = vld [vmem:[%s207 + $0x58] sm:$0xff]
        %v229 = vld [vmem:[%s207 + $0x60] sm:$0xff]
        %v230 = vld [vmem:[%s207 + $0x68] sm:$0xff]
        %v231 = vld [vmem:[%s207 + $0x70] sm:$0xff]
        %v232 = vld [vmem:[%s207 + $0x78] sm:$0xff]
        %v233 = vld [vmem:[%s207 + $0x80] sm:$0xff]
        %v234 = vld [vmem:[%s207 + $0x88] sm:$0xff]
        %v235 = vld [vmem:[%s207 + $0x90] sm:$0xff]
        %v236 = vld [vmem:[%s212] sm:$0xff]
        %v237 = vld [vmem:[%s212 + $0x8] sm:$0xff]
        %v238 = vld [vmem:[%s212 + $0x10] sm:$0xff]
        %v239 = vld [vmem:[%s212 + $0x18] sm:$0xff]
        %v240 = vld [vmem:[%s212 + $0x20] sm:$0xff]
        %v241 = vld [vmem:[%s212 + $0x28] sm:$0xff]
        %v242 = vld [vmem:[%s215] sm:$0x1]
        %v244 = vperm.slane %v242, 0
        %vm246 = vcmask 392192
        %v248 = vsel %vm246, %v217, 0
        %v251 = vsel %vm246, %v218, 0
        %v254 = vsel %vm246, %v219, 0
        %v257 = vsel %vm246, %v220, 0
        %v260 = vsel %vm246, %v221, 0
        %v263 = vsel %vm246, %v222, 0
        %v266 = vsel %vm246, %v223, 0
        %v269 = vsel %vm246, %v224, 0
        %v272 = vsel %vm246, %v225, 0
        %v275 = vsel %vm246, %v226, 0
        %v278 = vsel %vm246, %v227, 0
        %v281 = vsel %vm246, %v228, 0
        %v284 = vsel %vm246, %v229, 0
        %v287 = vsel %vm246, %v230, 0
        %v290 = vsel %vm246, %v231, 0
        %v293 = vsel %vm246, %v232, 0
        %v296 = vsel %vm246, %v233, 0
        %v299 = vsel %vm246, %v234, 0
        %v302 = vsel %vm246, %v235, 0
        %304 = vmatpush.msra.mxu0 0.0
        %305 = vmatpush.msra.mxu0 0.0
        %306 = vmatpush.msra.mxu0 0.0
        %307 = vmatpush.msra.mxu0 0.0
        %308 = vmatpush.msra.mxu0 0.0
        %309 = vmatpush.msra.mxu0 0.0
        %310 = vmatpush.msra.mxu0 0.0
        %311 = vmatpush.msra.mxu0 0.0
        %312 = vmatpush.msra.mxu0 0.0
        %313 = vmatpush.msra.mxu0 0.0
        %314 = vmatpush.msra.mxu0 %v241
        %315 = vmatpush.msra.mxu0 %v240
        %316 = vmatpush.msra.mxu0 %v239
        %317 = vmatpush.msra.mxu0 %v238
        %318 = vmatpush.msra.mxu0 %v237
        %319 = vmatpush.msra.mxu0 %v236
        %320 = vmatmul.f32.gmra.mxu0 %v248
        %v321 = vpop.f32.mrf.mxu0
        %v322 = vadd.f32 %v244, %v321
        %323 = vmatmul.f32.gmra.mxu0 %v251
        %v324 = vpop.f32.mrf.mxu0
        %v325 = vadd.f32 %v244, %v324
        %326 = vmatmul.f32.gmra.mxu0 %v254
        %v327 = vpop.f32.mrf.mxu0
        %v328 = vadd.f32 %v244, %v327
        %329 = vmatmul.f32.gmra.mxu0 %v257
        %v330 = vpop.f32.mrf.mxu0
        %v331 = vadd.f32 %v244, %v330
        %332 = vmatmul.f32.gmra.mxu0 %v260
        %v333 = vpop.f32.mrf.mxu0
        %v334 = vadd.f32 %v244, %v333
        %335 = vmatmul.f32.gmra.mxu0 %v263
        %v336 = vpop.f32.mrf.mxu0
        %v337 = vadd.f32 %v244, %v336
        %338 = vmatmul.f32.gmra.mxu0 %v266
        %v339 = vpop.f32.mrf.mxu0
        %v340 = vadd.f32 %v244, %v339
        %341 = vmatmul.f32.gmra.mxu0 %v269
        %v342 = vpop.f32.mrf.mxu0
        %v343 = vadd.f32 %v244, %v342
        %344 = vmatmul.f32.gmra.mxu0 %v272
        %v345 = vpop.f32.mrf.mxu0
        %v346 = vadd.f32 %v244, %v345
        %347 = vmatmul.f32.gmra.mxu0 %v275
        %v348 = vpop.f32.mrf.mxu0
        %v349 = vadd.f32 %v244, %v348
        %350 = vmatmul.f32.gmra.mxu0 %v278
        %v351 = vpop.f32.mrf.mxu0
        %v352 = vadd.f32 %v244, %v351
        %353 = vmatmul.f32.gmra.mxu0 %v281
        %v354 = vpop.f32.mrf.mxu0
        %v355 = vadd.f32 %v244, %v354
        %356 = vmatmul.f32.gmra.mxu0 %v284
        %v357 = vpop.f32.mrf.mxu0
        %v358 = vadd.f32 %v244, %v357
        %359 = vmatmul.f32.gmra.mxu0 %v287
        %v360 = vpop.f32.mrf.mxu0
        %v361 = vadd.f32 %v244, %v360
        %362 = vmatmul.f32.gmra.mxu0 %v290
        %v363 = vpop.f32.mrf.mxu0
        %v364 = vadd.f32 %v244, %v363
        %365 = vmatmul.f32.gmra.mxu0 %v293
        %v366 = vpop.f32.mrf.mxu0
        %v367 = vadd.f32 %v244, %v366
        %368 = vmatmul.f32.gmra.mxu0 %v296
        %v369 = vpop.f32.mrf.mxu0
        %v370 = vadd.f32 %v244, %v369
        %371 = vmatmul.f32.gmra.mxu0 %v299
        %v372 = vpop.f32.mrf.mxu0
        %v373 = vadd.f32 %v244, %v372
        %374 = vmatmul.f32.gmra.mxu0 %v302
        %v375 = vpop.f32.mrf.mxu0
        %v376 = vadd.f32 %v244, %v375
        %377 = vdwg.mxu0
        %378 = vst [vmem:[%s202] sm:$0xff] %v322
        %379 = vst [vmem:[%s202 + $0x8] sm:$0xff] %v325
        %380 = vst [vmem:[%s202 + $0x10] sm:$0xff] %v328
        %381 = vst [vmem:[%s202 + $0x18] sm:$0xff] %v331
        %382 = vst [vmem:[%s202 + $0x20] sm:$0xff] %v334
        %383 = vst [vmem:[%s202 + $0x28] sm:$0xff] %v337
        %384 = vst [vmem:[%s202 + $0x30] sm:$0xff] %v340
        %385 = vst [vmem:[%s202 + $0x38] sm:$0xff] %v343
        %386 = vst [vmem:[%s202 + $0x40] sm:$0xff] %v346
        %387 = vst [vmem:[%s202 + $0x48] sm:$0xff] %v349
        %388 = vst [vmem:[%s202 + $0x50] sm:$0xff] %v352
        %389 = vst [vmem:[%s202 + $0x58] sm:$0xff] %v355
        %390 = vst [vmem:[%s202 + $0x60] sm:$0xff] %v358
        %391 = vst [vmem:[%s202 + $0x68] sm:$0xff] %v361
        %392 = vst [vmem:[%s202 + $0x70] sm:$0xff] %v364
        %393 = vst [vmem:[%s202 + $0x78] sm:$0xff] %v367
        %394 = vst [vmem:[%s202 + $0x80] sm:$0xff] %v370
        %395 = vst [vmem:[%s202 + $0x88] sm:$0xff] %v373
        %396 = vst [vmem:[%s202 + $0x90] sm:$0xff] %v376
        %s397 = sand.u32 %s117, 1
        %s398 = scalar_lea.sflag [#allocation3], %s397
        %s399 = sand.u32 %s117, 1
        %s400 = smul.addr %s399, 152
        %s401 = scalar_lea.vmem [#allocation2], %s400
        // Predicated region
        $region33: #{tpu_custom_call.1} parent=31 // pred_check
          %p402 = pneg %p127
        $region34: #{tpu_custom_call.1} parent=31 // pred_check_branch
          %404 = sbr.rel (%p402) target = $region36
        $region35: #{tpu_custom_call.1} parent=31 // pred_region
          %s405 = smul.u32 19, %s21
          %407 = vsyncadd %s398, 0
          %s408 = sadd.s32 %s22, %s405
          %s409 = smul.addr %s408, 8
          %s410 = scalar_lea.hbm %s3, %s409
          %s411 = sshll.u32 %s401, 4
          %s412 = int_to_ptr.vmem [resolvable:$true] %s411
          %s413 = sshll.u32 %s410, 4
          %s414 = int_to_ptr.hbm [resolvable:$true] %s413
          %419 = dma.vmem_to_hbm [thread:$0]  %s412, 2432, %s414, %s398, 128, 128, 8
        $region36: #{tpu_custom_call.1} parent=31 // pred_fallthru
          _
      $region32: #{tpu_custom_call.1} parent=5 // pred_fallthru
        _
      %p420 = scmp.le.s32.totalorder 2, %s12
      // Predicated region
      $region37: #{tpu_custom_call.1} parent=5 // pred_check
        %p421 = pneg %p420
      $region38: #{tpu_custom_call.1} parent=5 // pred_check_branch
        %423 = sbr.rel (%p421) target = $region40
      $region39: #{tpu_custom_call.1} parent=5 // pred_region
        %s424 = ssub.s32 %s12, 2
        // Predicated region
        $region41: #{tpu_custom_call.1} parent=39 // pred_check
          %p425 = pneg %p133
        $region42: #{tpu_custom_call.1} parent=39 // pred_check_branch
          %427 = sbr.rel (%p425) target = $region44
        $region43: #{tpu_custom_call.1} parent=39 // pred_region
          %s428 = sand.u32 %s118, 1
          %s429 = scalar_lea.sflag [#allocation3], %s428
          %s430 = sand.u32 %s118, 1
          %s431 = smul.addr %s430, 152
          %s432 = scalar_lea.vmem [#allocation2], %s431
          %434 = dma.done %s429, 2432
        $region44: #{tpu_custom_call.1} parent=39 // pred_fallthru
          _
      $region40: #{tpu_custom_call.1} parent=5 // pred_fallthru
        _
    $region6: #{tpu_custom_call.1} parent=1 // loop_footer
      %s16 = sadd.s32 1, %s12
    $region7: #{tpu_custom_call.1} parent=1 // loop_footer_branch
      %11 = sbr.rel target = $region3
    $region8: #{tpu_custom_call.1} parent=1 // loop_exit
      _
    %435 = vsyncpa [#allocation3], 1
    %s436 = scalar_lea.sflag [#allocation3], 1
    %437 = vsyncpa %s436, 1

</llo_original>
